<compile_context>
chip_gen: v5e
topology: v5e:2x2
jax: 0.10.0
libtpu: 0.0.40
codegen_flags: <defaults>
</compile_context>

<pallas_src>
import math
import jax
import jax.numpy as jnp
from jax.experimental import pallas as pl
from jax.experimental.pallas import tpu as pltpu


def _noisy_linear_kernel(x_ref, eps_i_ref, mu_w_ref, sig_w_ref,
                         mu_b_ref, sig_b_ref, eps_j_ref, o_ref,
                         acc_mu_ref, acc_sig_ref):
    k = pl.program_id(1)

    @pl.when(k == 0)
    def _init():
        acc_mu_ref[...] = jnp.zeros_like(acc_mu_ref)
        acc_sig_ref[...] = jnp.zeros_like(acc_sig_ref)

    x = x_ref[...]                                   # (B, tk)
    # mu path: x @ mu_w[k-tile]
    acc_mu_ref[...] += jnp.dot(x, mu_w_ref[...],
                               preferred_element_type=jnp.float32)
    # sigma path: (x * eps_i) @ sig_w[k-tile]   (eps_j folded in at finalize)
    acc_sig_ref[...] += jnp.dot(x * eps_i_ref[...], sig_w_ref[...],
                                preferred_element_type=jnp.float32)

    @pl.when(k == pl.num_programs(1) - 1)
    def _finalize():
        eps_j = eps_j_ref[...]                       # (1, tn)
        bias = mu_b_ref[...] + sig_b_ref[...] * eps_j
        o_ref[...] = (acc_mu_ref[...] + eps_j * acc_sig_ref[...] + bias
                      ).astype(o_ref.dtype)


def _round_up(v, m):
    return ((v + m - 1) // m) * m


def factorized_noisy_linear(x, mu_w, sig_w, mu_b, sig_b, eps_i, eps_j,
                            *, tile_n=512, tile_k=512):
    """x: (B, num_in); mu_w/sig_w: (num_out, num_in); returns (B, num_out)."""
    B, K = x.shape
    N = mu_w.shape[0]

    # [K, N] weight layout so the matmul is plain [B,K] @ [K,N].
    mu_wT = mu_w.T
    sig_wT = sig_w.T

    # Tile sizes: lane-dense (multiples of 128), capped by the padded dims.
    tk = min(tile_k, _round_up(K, 128))
    tn = min(tile_n, _round_up(N, 128))
    Bp = _round_up(B, 8)
    Kp = _round_up(K, tk)
    Np = _round_up(N, tn)

    # Zero-padding keeps the math exact (padded K columns contribute 0; padded
    # B rows / N columns are sliced off at the end).
    x_p = jnp.pad(x, ((0, Bp - B), (0, Kp - K)))
    mu_wT_p = jnp.pad(mu_wT, ((0, Kp - K), (0, Np - N)))
    sig_wT_p = jnp.pad(sig_wT, ((0, Kp - K), (0, Np - N)))
    eps_i_p = jnp.pad(eps_i, (0, Kp - K)).reshape(1, Kp)
    eps_j_p = jnp.pad(eps_j, (0, Np - N)).reshape(1, Np)
    mu_b_p = jnp.pad(mu_b, (0, Np - N)).reshape(1, Np)
    sig_b_p = jnp.pad(sig_b, (0, Np - N)).reshape(1, Np)

    grid = (Np // tn, Kp // tk)   # (output-tile axis, reduction axis last)

    out = pl.pallas_call(
        _noisy_linear_kernel,
        out_shape=jax.ShapeDtypeStruct((Bp, Np), x.dtype),
        grid_spec=pltpu.PrefetchScalarGridSpec(
            num_scalar_prefetch=0,
            grid=grid,
            in_specs=[
                pl.BlockSpec((Bp, tk), lambda j, k: (0, k)),   # x
                pl.BlockSpec((1, tk), lambda j, k: (0, k)),    # eps_i (row)
                pl.BlockSpec((tk, tn), lambda j, k: (k, j)),   # mu_w  [K,N]
                pl.BlockSpec((tk, tn), lambda j, k: (k, j)),   # sig_w [K,N]
                pl.BlockSpec((1, tn), lambda j, k: (0, j)),    # mu_b
                pl.BlockSpec((1, tn), lambda j, k: (0, j)),    # sig_b
                pl.BlockSpec((1, tn), lambda j, k: (0, j)),    # eps_j (row)
            ],
            out_specs=pl.BlockSpec((Bp, tn), lambda j, k: (0, j)),
            scratch_shapes=[pltpu.VMEM((Bp, tn), jnp.float32),
                            pltpu.VMEM((Bp, tn), jnp.float32)],
        ),
        compiler_params=pltpu.CompilerParams(
            dimension_semantics=("parallel", "arbitrary"),
            vmem_limit_bytes=32 * 1024 * 1024,
        ),
    )(x_p, eps_i_p, mu_wT_p, sig_wT_p, mu_b_p, sig_b_p, eps_j_p)

    return out[:B, :N]


def _factorized_noise(key, n):
    """reset_noise: eps = sign(randn) * sqrt(|randn|)."""
    e = jax.random.normal(key, (n,), dtype=jnp.float32)
    return jnp.sign(e) * jnp.sqrt(jnp.abs(e))


def init_params(key, num_in, num_out):
    """reset_parameters: mu ~ U(-std, std), sigma = 0.5/sqrt(num_in)."""
    std = 1.0 / math.sqrt(num_in)
    k1, k2 = jax.random.split(key)
    mu_w = jax.random.uniform(k1, (num_out, num_in), jnp.float32, -std, std)
    mu_b = jax.random.uniform(k2, (num_out,), jnp.float32, -std, std)
    sig_w = jnp.full((num_out, num_in), 0.5 / math.sqrt(num_in), jnp.float32)
    sig_b = jnp.full((num_out,), 0.5 / math.sqrt(num_in), jnp.float32)
    return mu_w, mu_b, sig_w, sig_b


if __name__ == "__main__":
    # Small, deliberately non-aligned shapes to exercise padding + multi-step grid
    # (with tile 128: grid = (2 output tiles, 3 reduction steps)).
    num_in, num_out, batch = 300, 200, 5

    key = jax.random.PRNGKey(0)
    k_param, k_x, k_ei, k_ej = jax.random.split(key, 4)

    mu_w, mu_b, sig_w, sig_b = init_params(k_param, num_in, num_out)
    x = jax.random.normal(k_x, (batch, num_in), dtype=jnp.float32)

    # forward() calls reset_noise() each time (is_training=True path).
    eps_i = _factorized_noise(k_ei, num_in)
    eps_j = _factorized_noise(k_ej, num_out)

    y = factorized_noisy_linear(x, mu_w, sig_w, mu_b, sig_b, eps_i, eps_j,
                                tile_n=128, tile_k=128)
    y = jax.block_until_ready(y)

    # Pure-JAX reference check (matches the PyTorch module exactly).
    w_ref = mu_w + sig_w * (eps_j[:, None] * eps_i[None, :])
    b_ref = mu_b + sig_b * eps_j
    y_ref = x @ w_ref.T + b_ref
    assert y.shape == y_ref.shape, "shape mismatch vs reference"
    assert jnp.allclose(y, y_ref, atol=1e-4, rtol=1e-4), "mismatch vs reference"

    print("KERNEL_OK")
</pallas_src>

<mosaic_0001>
module attributes {stable_mosaic.version = 11 : i64} {
  func.func @_noisy_linear_kernel(%arg0: i32, %arg1: i32, %arg2: memref<8x128xf32, #tpu.memory_space<vmem>>, %arg3: memref<1x128xf32, #tpu.memory_space<vmem>>, %arg4: memref<128x128xf32, #tpu.memory_space<vmem>>, %arg5: memref<128x128xf32, #tpu.memory_space<vmem>>, %arg6: memref<1x128xf32, #tpu.memory_space<vmem>>, %arg7: memref<1x128xf32, #tpu.memory_space<vmem>>, %arg8: memref<1x128xf32, #tpu.memory_space<vmem>>, %arg9: memref<8x128xf32, #tpu.memory_space<vmem>>, %arg10: memref<8x128xf32, #tpu.memory_space<vmem>>, %arg11: memref<8x128xf32, #tpu.memory_space<vmem>>) attributes {dimension_semantics = [#tpu.dimension_semantics<parallel>, #tpu.dimension_semantics<arbitrary>], iteration_bounds = array<i64: 2, 3>, scalar_prefetch = 0 : i64, scratch_operands = 2 : i64, tpu.core_type = #tpu.core_type<tc>, window_params = [{transform_indices = @transform_0, window_bounds = array<i64: 8, 128>}, {transform_indices = @transform_1, window_bounds = array<i64: 1, 128>}, {transform_indices = @transform_2, window_bounds = array<i64: 128, 128>}, {transform_indices = @transform_3, window_bounds = array<i64: 128, 128>}, {transform_indices = @transform_4, window_bounds = array<i64: 1, 128>}, {transform_indices = @transform_5, window_bounds = array<i64: 1, 128>}, {transform_indices = @transform_6, window_bounds = array<i64: 1, 128>}, {transform_indices = @transform_7, window_bounds = array<i64: 8, 128>}]} {
    %c0_i32 = arith.constant 0 : i32
    %0 = arith.cmpi eq, %arg1, %c0_i32 : i32
    %1 = arith.extui %0 : i1 to i32
    %c0_i32_0 = arith.constant 0 : i32
    %2 = arith.cmpi ne, %1, %c0_i32_0 : i32
    scf.if %2 {
      %cst_18 = arith.constant 0.000000e+00 : f32
      %20 = vector.broadcast %cst_18 : f32 to vector<8x128xf32>
      %c0_19 = arith.constant 0 : index
      %c0_20 = arith.constant 0 : index
      %21 = vector.load %arg10[%c0_19, %c0_20] : memref<8x128xf32, #tpu.memory_space<vmem>>, vector<8x128xf32>
      tpu.vector_store %arg10[%c0_19, %c0_20], %20 {strides = array<i32>} : memref<8x128xf32, #tpu.memory_space<vmem>>, vector<8x128xf32>,
      %cst_21 = arith.constant 0.000000e+00 : f32
      %22 = vector.broadcast %cst_21 : f32 to vector<8x128xf32>
      %c0_22 = arith.constant 0 : index
      %c0_23 = arith.constant 0 : index
      %23 = vector.load %arg11[%c0_22, %c0_23] : memref<8x128xf32, #tpu.memory_space<vmem>>, vector<8x128xf32>
      tpu.vector_store %arg11[%c0_22, %c0_23], %22 {strides = array<i32>} : memref<8x128xf32, #tpu.memory_space<vmem>>, vector<8x128xf32>,
    } else {
    }
    %c0 = arith.constant 0 : index
    %c0_1 = arith.constant 0 : index
    %3 = vector.load %arg2[%c0, %c0_1] : memref<8x128xf32, #tpu.memory_space<vmem>>, vector<8x128xf32>
    %c0_2 = arith.constant 0 : index
    %c0_3 = arith.constant 0 : index
    %4 = vector.load %arg10[%c0_2, %c0_3] : memref<8x128xf32, #tpu.memory_space<vmem>>, vector<8x128xf32>
    %c0_4 = arith.constant 0 : index
    %c0_5 = arith.constant 0 : index
    %5 = vector.load %arg4[%c0_4, %c0_5] : memref<128x128xf32, #tpu.memory_space<vmem>>, vector<128x128xf32>
    %cst = arith.constant dense<0.000000e+00> : vector<8x128xf32>
    %6 = tpu.matmul %3, %5, %cst {dimension_numbers = #tpu.dot_dimension_numbers<[1], [0], [0], [1], [0, 0, 1, 1], [], []>} : vector<8x128xf32>, vector<128x128xf32>, vector<8x128xf32> -> vector<8x128xf32>
    %7 = arith.addf %4, %6 : vector<8x128xf32>
    %c0_6 = arith.constant 0 : index
    %c0_7 = arith.constant 0 : index
    %8 = vector.load %arg10[%c0_6, %c0_7] : memref<8x128xf32, #tpu.memory_space<vmem>>, vector<8x128xf32>
    tpu.vector_store %arg10[%c0_6, %c0_7], %7 {strides = array<i32>} : memref<8x128xf32, #tpu.memory_space<vmem>>, vector<8x128xf32>,
    %c0_8 = arith.constant 0 : index
    %c0_9 = arith.constant 0 : index
    %9 = vector.load %arg11[%c0_8, %c0_9] : memref<8x128xf32, #tpu.memory_space<vmem>>, vector<8x128xf32>
    %c0_10 = arith.constant 0 : index
    %c0_11 = arith.constant 0 : index
    %10 = vector.load %arg3[%c0_10, %c0_11] : memref<1x128xf32, #tpu.memory_space<vmem>>, vector<1x128xf32>
    %11 = vector.broadcast %10 : vector<1x128xf32> to vector<8x128xf32>
    %12 = arith.mulf %3, %11 : vector<8x128xf32>
    %c0_12 = arith.constant 0 : index
    %c0_13 = arith.constant 0 : index
    %13 = vector.load %arg5[%c0_12, %c0_13] : memref<128x128xf32, #tpu.memory_space<vmem>>, vector<128x128xf32>
    %cst_14 = arith.constant dense<0.000000e+00> : vector<8x128xf32>
    %14 = tpu.matmul %12, %13, %cst_14 {dimension_numbers = #tpu.dot_dimension_numbers<[1], [0], [0], [1], [0, 0, 1, 1], [], []>} : vector<8x128xf32>, vector<128x128xf32>, vector<8x128xf32> -> vector<8x128xf32>
    %15 = arith.addf %9, %14 : vector<8x128xf32>
    %c0_15 = arith.constant 0 : index
    %c0_16 = arith.constant 0 : index
    %16 = vector.load %arg11[%c0_15, %c0_16] : memref<8x128xf32, #tpu.memory_space<vmem>>, vector<8x128xf32>
    tpu.vector_store %arg11[%c0_15, %c0_16], %15 {strides = array<i32>} : memref<8x128xf32, #tpu.memory_space<vmem>>, vector<8x128xf32>,
    %c2_i32 = arith.constant 2 : i32
    %17 = arith.cmpi eq, %arg1, %c2_i32 : i32
    %18 = arith.extui %17 : i1 to i32
    %c0_i32_17 = arith.constant 0 : i32
    %19 = arith.cmpi ne, %18, %c0_i32_17 : i32
    scf.if %19 {
      %c0_18 = arith.constant 0 : index
      %c0_19 = arith.constant 0 : index
      %20 = vector.load %arg8[%c0_18, %c0_19] : memref<1x128xf32, #tpu.memory_space<vmem>>, vector<1x128xf32>
      %c0_20 = arith.constant 0 : index
      %c0_21 = arith.constant 0 : index
      %21 = vector.load %arg6[%c0_20, %c0_21] : memref<1x128xf32, #tpu.memory_space<vmem>>, vector<1x128xf32>
      %c0_22 = arith.constant 0 : index
      %c0_23 = arith.constant 0 : index
      %22 = vector.load %arg7[%c0_22, %c0_23] : memref<1x128xf32, #tpu.memory_space<vmem>>, vector<1x128xf32>
      %23 = arith.mulf %22, %20 : vector<1x128xf32>
      %24 = arith.addf %21, %23 : vector<1x128xf32>
      %c0_24 = arith.constant 0 : index
      %c0_25 = arith.constant 0 : index
      %25 = vector.load %arg10[%c0_24, %c0_25] : memref<8x128xf32, #tpu.memory_space<vmem>>, vector<8x128xf32>
      %c0_26 = arith.constant 0 : index
      %c0_27 = arith.constant 0 : index
      %26 = vector.load %arg11[%c0_26, %c0_27] : memref<8x128xf32, #tpu.memory_space<vmem>>, vector<8x128xf32>
      %27 = vector.broadcast %20 : vector<1x128xf32> to vector<8x128xf32>
      %28 = arith.mulf %27, %26 : vector<8x128xf32>
      %29 = arith.addf %25, %28 : vector<8x128xf32>
      %30 = vector.broadcast %24 : vector<1x128xf32> to vector<8x128xf32>
      %31 = arith.addf %29, %30 : vector<8x128xf32>
      %c0_28 = arith.constant 0 : index
      %c0_29 = arith.constant 0 : index
      %32 = vector.load %arg9[%c0_28, %c0_29] : memref<8x128xf32, #tpu.memory_space<vmem>>, vector<8x128xf32>
      tpu.vector_store %arg9[%c0_28, %c0_29], %31 {strides = array<i32>} : memref<8x128xf32, #tpu.memory_space<vmem>>, vector<8x128xf32>,
    } else {
    }
    return
  }
  func.func @transform_0(%arg0: i32, %arg1: i32) -> (i32, i32) {
    %c0_i32 = arith.constant 0 : i32
    %c0_i32_0 = arith.constant 0 : i32
    return %c0_i32, %arg1 : i32, i32
  }
  func.func @transform_1(%arg0: i32, %arg1: i32) -> (i32, i32) {
    %c0_i32 = arith.constant 0 : i32
    %c0_i32_0 = arith.constant 0 : i32
    return %c0_i32, %arg1 : i32, i32
  }
  func.func @transform_2(%arg0: i32, %arg1: i32) -> (i32, i32) {
    %c0_i32 = arith.constant 0 : i32
    return %arg1, %arg0 : i32, i32
  }
  func.func @transform_3(%arg0: i32, %arg1: i32) -> (i32, i32) {
    %c0_i32 = arith.constant 0 : i32
    return %arg1, %arg0 : i32, i32
  }
  func.func @transform_4(%arg0: i32, %arg1: i32) -> (i32, i32) {
    %c0_i32 = arith.constant 0 : i32
    %c0_i32_0 = arith.constant 0 : i32
    return %c0_i32, %arg0 : i32, i32
  }
  func.func @transform_5(%arg0: i32, %arg1: i32) -> (i32, i32) {
    %c0_i32 = arith.constant 0 : i32
    %c0_i32_0 = arith.constant 0 : i32
    return %c0_i32, %arg0 : i32, i32
  }
  func.func @transform_6(%arg0: i32, %arg1: i32) -> (i32, i32) {
    %c0_i32 = arith.constant 0 : i32
    %c0_i32_0 = arith.constant 0 : i32
    return %c0_i32, %arg0 : i32, i32
  }
  func.func @transform_7(%arg0: i32, %arg1: i32) -> (i32, i32) {
    %c0_i32 = arith.constant 0 : i32
    %c0_i32_0 = arith.constant 0 : i32
    return %c0_i32, %arg0 : i32, i32
  }
}

</mosaic_0001>

<llo_original>
// kernel: tpu_custom_call.1
$region0: #{tpu_custom_call.1}
  #allocation0 [shape = 'u32[]', space=smem, size = 0x4, offset = 0x4, fixed_abs, tag = 'smem constant byte address 0x4 - core index']
  #allocation1 [shape = 'u32[72,128]{1,0:T(1,128)}', space=vmem, size = 0x9000, scoped, tag = 'internal scratch']
  #allocation2 [shape = 'f32[8,128]{1,0:T(8,128)}', space=vmem, size = 0x1000, scoped, tag = 'scratch operand']
  #allocation3 [shape = 'f32[8,128]{1,0:T(8,128)}', space=vmem, size = 0x1000, scoped, tag = 'scratch operand']
  %s0 = inlined_call_operand.hbm [shape: f32[8,384], index: 0, kind: input, shape index: {}]
  %s1 = inlined_call_operand.hbm [shape: f32[1,384], index: 1, kind: input, shape index: {}]
  %s2 = inlined_call_operand.hbm [shape: f32[384,256], index: 2, kind: input, shape index: {}]
  %s3 = inlined_call_operand.hbm [shape: f32[384,256], index: 3, kind: input, shape index: {}]
  %s4 = inlined_call_operand.vmem [shape: f32[1,256], index: 4, kind: input, shape index: {}]
  %s5 = inlined_call_operand.vmem [shape: f32[1,256], index: 5, kind: input, shape index: {}]
  %s6 = inlined_call_operand.hbm [shape: f32[1,256], index: 6, kind: input, shape index: {}]
  %s7 = inlined_call_operand.hbm [shape: f32[8,256], index: 7, kind: output, shape index: {}]
  %s8 = sld [smem:[#allocation0]]
  $region89: #{tpu_custom_call.1} parent=0
    _
  %s10 = ssub.s32 1, %s8
  %s11 = scalar_select 0, %s10, %s8
  $region1: #{tpu_custom_call.1} parent=0
    #allocation4 [shape = 'u8[8192]{0}', space=vmem, size = 0x2000, scoped, tag = 'input window, operand 0']
    #allocation5 [shape = 's32[2]{0}', space=sflag, size = 0x8, scoped, tag = 'scoped memory for tpu_custom_call.1']
    #allocation6 [shape = 's32[2]{0}', space=sflag, size = 0x8, scoped, tag = 'scoped memory for tpu_custom_call.1']
    #allocation7 [shape = 'u8[1024]{0}', space=vmem, size = 0x400, scoped, tag = 'input window, operand 1']
    #allocation8 [shape = 's32[2]{0}', space=sflag, size = 0x8, scoped, tag = 'scoped memory for tpu_custom_call.1']
    #allocation9 [shape = 'u8[131072]{0}', space=vmem, size = 0x20000, scoped, tag = 'input window, operand 2']
    #allocation10 [shape = 'u8[131072]{0}', space=vmem, size = 0x20000, scoped, tag = 'input window, operand 3']
    #allocation11 [shape = 's32[2]{0}', space=sflag, size = 0x8, scoped, tag = 'scoped memory for tpu_custom_call.1']
    #allocation12 [shape = 'u8[1024]{0}', space=vmem, size = 0x400, scoped, tag = 'input window, operand 6']
    #allocation13 [shape = 'u8[8192]{0}', space=vmem, size = 0x2000, scoped, tag = 'output window, operand 0']
    %12 = vsyncpa [#allocation5], 0
    %s13 = scalar_lea.sflag [#allocation5], 1
    %14 = vsyncpa %s13, 0
    %15 = vsyncpa [#allocation8], 0
    %s16 = scalar_lea.sflag [#allocation8], 1
    %17 = vsyncpa %s16, 0
    %18 = vsyncpa [#allocation11], 0
    %s19 = scalar_lea.sflag [#allocation11], 1
    %20 = vsyncpa %s19, 0
    %21 = vsyncpa [#allocation6], 0
    %s22 = scalar_lea.sflag [#allocation6], 1
    %23 = vsyncpa %s22, 0
    loop: start=0, step=1, limit=8
    $region2: #{tpu_custom_call.1} parent=1 // loop_pre_header
      _
    $region3: #{tpu_custom_call.1} parent=1 // loop_header
      %s25 = sphi 0, %s29
      %p26 = scmp.ge.s32.totalorder %s25, 8
      %s32 = sphi 0, %s44
      %s33 = sphi 0, %s40
      %s34 = sphi 0, %s32
      %s35 = sphi 0, %s33
      %s36 = sphi 0, %s34
      %s37 = sphi 0, %s35
      %s47 = sphi 0, %s49
      %s50 = sphi 0, %s47
      %s51 = sphi 0, %s50
      %s67 = sphi 0, %s51
      %s73 = sphi 0, %s75
      %s76 = sphi 0, %s73
      %s77 = sphi 0, %s76
      %s93 = sphi 0, %s77
      %s101 = sphi 0, %s103
      %s104 = sphi 0, %s101
      %s105 = sphi 0, %s104
      %s121 = sphi 0, %s105
      %s129 = sphi 0, %s131
      %s132 = sphi 0, %s129
      %s133 = sphi 0, %s132
      %s149 = sphi 0, %s133
      %s155 = sphi 0, %s157
      %s158 = sphi 0, %s155
      %s159 = sphi 0, %s158
      %s175 = sphi 0, %s159
      %s181 = sphi 0, %s183
      %s184 = sphi 0, %s181
      %s185 = sphi 0, %s184
      %s201 = sphi 0, %s185
      %s207 = sphi 0, %s209
      %s210 = sphi 0, %s207
      %s211 = sphi 0, %s210
      %s227 = sphi 0, %s211
      %s233 = sphi 0, %s235
      %s236 = sphi 0, %s233
      %s237 = sphi 0, %s236
      %s253 = sphi 0, %s237
    $region4: #{tpu_custom_call.1} parent=1 // loop_header_branch
      %28 = sbr.rel (%p26) target = $region8
    $region5: #{tpu_custom_call.1} parent=1 // loop_body
      %s30 = ssub.s32 %s25, 1
      %s31 = ssub.s32 %s25, 2
      %s38 = sadd.s32 1, %s33
      %p39 = scmp.ge.s32.totalorder %s38, 3
      %s40 = scalar_select %p39, 0, %s38
      %s41 = sadd.s32 1, %s32
      %s42 = scalar_select %p39, %s41, %s32
      %p43 = scmp.ge.s32.totalorder %s42, 2
      %s44 = scalar_select %p43, 0, %s42
      %s45 = ssub.s32 %s33, %s40
      %p46 = scmp.eq.s32.totalorder %s45, 0
      %s48 = sadd.s32 %s47, 1
      %s49 = scalar_select %p46, %s47, %s48
      %p52 = pneg %p46
      %p53 = scmp.eq.s32.totalorder %s25, 5
      %p54 = por %p52, %p53
      %p55 = scmp.ne.s32.totalorder %s47, %s50
      %p56 = scmp.eq.s32.totalorder %s25, 0
      %p57 = por %p55, %p56
      %p58 = scmp.ne.s32.totalorder %s47, %s50
      %p59 = scmp.eq.s32.totalorder %s30, 5
      %p60 = por %p58, %p59
      %p61 = scmp.ne.s32.totalorder %s50, %s51
      %p62 = scmp.eq.s32.totalorder %s30, 0
      %p63 = por %p61, %p62
      %p64 = scmp.ne.s32.totalorder %s50, %s51
      %p65 = scmp.eq.s32.totalorder %s31, 5
      %p66 = por %p64, %p65
      %p68 = scmp.ne.s32.totalorder %s51, %s67
      %p69 = scmp.eq.s32.totalorder %s31, 0
      %p70 = por %p68, %p69
      %s71 = ssub.s32 %s33, %s40
      %p72 = scmp.eq.s32.totalorder %s71, 0
      %s74 = sadd.s32 %s73, 1
      %s75 = scalar_select %p72, %s73, %s74
      %p78 = pneg %p72
      %p79 = scmp.eq.s32.totalorder %s25, 5
      %p80 = por %p78, %p79
      %p81 = scmp.ne.s32.totalorder %s73, %s76
      %p82 = scmp.eq.s32.totalorder %s25, 0
      %p83 = por %p81, %p82
      %p84 = scmp.ne.s32.totalorder %s73, %s76
      %p85 = scmp.eq.s32.totalorder %s30, 5
      %p86 = por %p84, %p85
      %p87 = scmp.ne.s32.totalorder %s76, %s77
      %p88 = scmp.eq.s32.totalorder %s30, 0
      %p89 = por %p87, %p88
      %p90 = scmp.ne.s32.totalorder %s76, %s77
      %p91 = scmp.eq.s32.totalorder %s31, 5
      %p92 = por %p90, %p91
      %p94 = scmp.ne.s32.totalorder %s77, %s93
      %p95 = scmp.eq.s32.totalorder %s31, 0
      %p96 = por %p94, %p95
      %s97 = ssub.s32 %s33, %s40
      %s98 = ssub.s32 %s32, %s44
      %s99 = sor.u32 %s97, %s98
      %p100 = scmp.eq.s32.totalorder %s99, 0
      %s102 = sadd.s32 %s101, 1
      %s103 = scalar_select %p100, %s101, %s102
      %p106 = pneg %p100
      %p107 = scmp.eq.s32.totalorder %s25, 5
      %p108 = por %p106, %p107
      %p109 = scmp.ne.s32.totalorder %s101, %s104
      %p110 = scmp.eq.s32.totalorder %s25, 0
      %p111 = por %p109, %p110
      %p112 = scmp.ne.s32.totalorder %s101, %s104
      %p113 = scmp.eq.s32.totalorder %s30, 5
      %p114 = por %p112, %p113
      %p115 = scmp.ne.s32.totalorder %s104, %s105
      %p116 = scmp.eq.s32.totalorder %s30, 0
      %p117 = por %p115, %p116
      %p118 = scmp.ne.s32.totalorder %s104, %s105
      %p119 = scmp.eq.s32.totalorder %s31, 5
      %p120 = por %p118, %p119
      %p122 = scmp.ne.s32.totalorder %s105, %s121
      %p123 = scmp.eq.s32.totalorder %s31, 0
      %p124 = por %p122, %p123
      %s125 = ssub.s32 %s33, %s40
      %s126 = ssub.s32 %s32, %s44
      %s127 = sor.u32 %s125, %s126
      %p128 = scmp.eq.s32.totalorder %s127, 0
      %s130 = sadd.s32 %s129, 1
      %s131 = scalar_select %p128, %s129, %s130
      %p134 = pneg %p128
      %p135 = scmp.eq.s32.totalorder %s25, 5
      %p136 = por %p134, %p135
      %p137 = scmp.ne.s32.totalorder %s129, %s132
      %p138 = scmp.eq.s32.totalorder %s25, 0
      %p139 = por %p137, %p138
      %p140 = scmp.ne.s32.totalorder %s129, %s132
      %p141 = scmp.eq.s32.totalorder %s30, 5
      %p142 = por %p140, %p141
      %p143 = scmp.ne.s32.totalorder %s132, %s133
      %p144 = scmp.eq.s32.totalorder %s30, 0
      %p145 = por %p143, %p144
      %p146 = scmp.ne.s32.totalorder %s132, %s133
      %p147 = scmp.eq.s32.totalorder %s31, 5
      %p148 = por %p146, %p147
      %p150 = scmp.ne.s32.totalorder %s133, %s149
      %p151 = scmp.eq.s32.totalorder %s31, 0
      %p152 = por %p150, %p151
      %s153 = ssub.s32 %s32, %s44
      %p154 = scmp.eq.s32.totalorder %s153, 0
      %s156 = sadd.s32 %s155, 1
      %s157 = scalar_select %p154, %s155, %s156
      %p160 = pneg %p154
      %p161 = scmp.eq.s32.totalorder %s25, 5
      %p162 = por %p160, %p161
      %p163 = scmp.ne.s32.totalorder %s155, %s158
      %p164 = scmp.eq.s32.totalorder %s25, 0
      %p165 = por %p163, %p164
      %p166 = scmp.ne.s32.totalorder %s155, %s158
      %p167 = scmp.eq.s32.totalorder %s30, 5
      %p168 = por %p166, %p167
      %p169 = scmp.ne.s32.totalorder %s158, %s159
      %p170 = scmp.eq.s32.totalorder %s30, 0
      %p171 = por %p169, %p170
      %p172 = scmp.ne.s32.totalorder %s158, %s159
      %p173 = scmp.eq.s32.totalorder %s31, 5
      %p174 = por %p172, %p173
      %p176 = scmp.ne.s32.totalorder %s159, %s175
      %p177 = scmp.eq.s32.totalorder %s31, 0
      %p178 = por %p176, %p177
      %s179 = ssub.s32 %s32, %s44
      %p180 = scmp.eq.s32.totalorder %s179, 0
      %s182 = sadd.s32 %s181, 1
      %s183 = scalar_select %p180, %s181, %s182
      %p186 = pneg %p180
      %p187 = scmp.eq.s32.totalorder %s25, 5
      %p188 = por %p186, %p187
      %p189 = scmp.ne.s32.totalorder %s181, %s184
      %p190 = scmp.eq.s32.totalorder %s25, 0
      %p191 = por %p189, %p190
      %p192 = scmp.ne.s32.totalorder %s181, %s184
      %p193 = scmp.eq.s32.totalorder %s30, 5
      %p194 = por %p192, %p193
      %p195 = scmp.ne.s32.totalorder %s184, %s185
      %p196 = scmp.eq.s32.totalorder %s30, 0
      %p197 = por %p195, %p196
      %p198 = scmp.ne.s32.totalorder %s184, %s185
      %p199 = scmp.eq.s32.totalorder %s31, 5
      %p200 = por %p198, %p199
      %p202 = scmp.ne.s32.totalorder %s185, %s201
      %p203 = scmp.eq.s32.totalorder %s31, 0
      %p204 = por %p202, %p203
      %s205 = ssub.s32 %s32, %s44
      %p206 = scmp.eq.s32.totalorder %s205, 0
      %s208 = sadd.s32 %s207, 1
      %s209 = scalar_select %p206, %s207, %s208
      %p212 = pneg %p206
      %p213 = scmp.eq.s32.totalorder %s25, 5
      %p214 = por %p212, %p213
      %p215 = scmp.ne.s32.totalorder %s207, %s210
      %p216 = scmp.eq.s32.totalorder %s25, 0
      %p217 = por %p215, %p216
      %p218 = scmp.ne.s32.totalorder %s207, %s210
      %p219 = scmp.eq.s32.totalorder %s30, 5
      %p220 = por %p218, %p219
      %p221 = scmp.ne.s32.totalorder %s210, %s211
      %p222 = scmp.eq.s32.totalorder %s30, 0
      %p223 = por %p221, %p222
      %p224 = scmp.ne.s32.totalorder %s210, %s211
      %p225 = scmp.eq.s32.totalorder %s31, 5
      %p226 = por %p224, %p225
      %p228 = scmp.ne.s32.totalorder %s211, %s227
      %p229 = scmp.eq.s32.totalorder %s31, 0
      %p230 = por %p228, %p229
      %s231 = ssub.s32 %s32, %s44
      %p232 = scmp.eq.s32.totalorder %s231, 0
      %s234 = sadd.s32 %s233, 1
      %s235 = scalar_select %p232, %s233, %s234
      %p238 = pneg %p232
      %p239 = scmp.eq.s32.totalorder %s25, 5
      %p240 = por %p238, %p239
      %p241 = scmp.ne.s32.totalorder %s233, %s236
      %p242 = scmp.eq.s32.totalorder %s25, 0
      %p243 = por %p241, %p242
      %p244 = scmp.ne.s32.totalorder %s233, %s236
      %p245 = scmp.eq.s32.totalorder %s30, 5
      %p246 = por %p244, %p245
      %p247 = scmp.ne.s32.totalorder %s236, %s237
      %p248 = scmp.eq.s32.totalorder %s30, 0
      %p249 = por %p247, %p248
      %p250 = scmp.ne.s32.totalorder %s236, %s237
      %p251 = scmp.eq.s32.totalorder %s31, 5
      %p252 = por %p250, %p251
      %p254 = scmp.ne.s32.totalorder %s237, %s253
      %p255 = scmp.eq.s32.totalorder %s31, 0
      %p256 = por %p254, %p255
      %p257 = scmp.le.s32.totalorder 1, %s25
      %p258 = scmp.lt.s32.totalorder %s25, 7
      %p259 = pnand %p257, %p258
      %p260 = pneg %p259
      // Predicated region
      $region9: #{tpu_custom_call.1} parent=5 // pred_check
        _
      $region10: #{tpu_custom_call.1} parent=5 // pred_check_branch
        %262 = sbr.rel (%p259) target = $region12
      $region11: #{tpu_custom_call.1} parent=5 // pred_region
        %s263 = ssub.s32 %s25, 1
      $region12: #{tpu_custom_call.1} parent=5 // pred_fallthru
        _
      %p264 = scmp.lt.s32.totalorder %s25, 6
      // Predicated region
      $region13: #{tpu_custom_call.1} parent=5 // pred_check
        %p265 = pneg %p264
      $region14: #{tpu_custom_call.1} parent=5 // pred_check_branch
        %267 = sbr.rel (%p265) target = $region16
      $region15: #{tpu_custom_call.1} parent=5 // pred_region
        // Predicated region
        $region17: #{tpu_custom_call.1} parent=15 // pred_check
          %p268 = pneg %p57
        $region18: #{tpu_custom_call.1} parent=15 // pred_check_branch
          %270 = sbr.rel (%p268) target = $region20
        $region19: #{tpu_custom_call.1} parent=15 // pred_region
          %s271 = sand.u32 %s47, 1
          %s272 = scalar_lea.sflag [#allocation5], %s271
          %s273 = sand.u32 %s47, 1
          %s274 = smul.addr %s273, 8
          %s275 = scalar_lea.vmem [#allocation4], %s274
          %277 = vsyncadd %s272, 0
          %s278 = smul.addr %s33, 8
          %s279 = scalar_lea.hbm %s0, %s278
          %s281 = sshll.u32 %s279, 4
          %s282 = int_to_ptr.hbm [resolvable:$true] %s281
          %s283 = sshll.u32 %s275, 4
          %s284 = int_to_ptr.vmem [resolvable:$true] %s283
          %286 = dma.hbm_to_vmem [thread:$0]  %s282, 128, %s284, %s272
        $region20: #{tpu_custom_call.1} parent=15 // pred_fallthru
          _
        // Predicated region
        $region21: #{tpu_custom_call.1} parent=15 // pred_check
          %p287 = pneg %p83
        $region22: #{tpu_custom_call.1} parent=15 // pred_check_branch
          %289 = sbr.rel (%p287) target = $region24
        $region23: #{tpu_custom_call.1} parent=15 // pred_region
          %s290 = sand.u32 %s25, 1
          %s291 = scalar_lea.sflag [#allocation8], %s290
          %s292 = sand.u32 %s73, 1
          %s293 = scalar_lea.vmem [#allocation7], %s292
          %295 = vsyncadd %s291, 0
          %s296 = scalar_lea.hbm %s1, %s33
          %s298 = sshll.u32 %s296, 4
          %s299 = int_to_ptr.hbm [resolvable:$true] %s298
          %s300 = sshll.u32 %s293, 4
          %s301 = int_to_ptr.vmem [resolvable:$true] %s300
          %303 = dma.hbm_to_vmem [thread:$0]  %s299, 16, %s301, %s291
        $region24: #{tpu_custom_call.1} parent=15 // pred_fallthru
          _
        // Predicated region
        $region25: #{tpu_custom_call.1} parent=15 // pred_check
          %p304 = pneg %p111
        $region26: #{tpu_custom_call.1} parent=15 // pred_check_branch
          %306 = sbr.rel (%p304) target = $region28
        $region27: #{tpu_custom_call.1} parent=15 // pred_region
          %s307 = sand.u32 %s25, 1
          %s308 = scalar_lea.sflag [#allocation8], %s307
          %s309 = sand.u32 %s101, 1
          %s310 = smul.addr %s309, 128
          %s311 = scalar_lea.vmem [#allocation9], %s310
          %s312 = smul.u32 16, %s33
          %314 = vsyncadd %s308, 0
          %s315 = smul.addr %s312, 2
          %s316 = sadd.s32 %s32, %s315
          %s317 = smul.addr %s316, 8
          %s318 = scalar_lea.hbm %s2, %s317
          %s319 = sshll.u32 %s318, 4
          %s320 = int_to_ptr.hbm [resolvable:$true] %s319
          %s321 = sshll.u32 %s311, 4
          %s322 = int_to_ptr.vmem [resolvable:$true] %s321
          %327 = dma.hbm_to_vmem [thread:$0]  %s320, 2048, %s322, %s308, 256, 128, 8
        $region28: #{tpu_custom_call.1} parent=15 // pred_fallthru
          _
        // Predicated region
        $region29: #{tpu_custom_call.1} parent=15 // pred_check
          %p328 = pneg %p139
        $region30: #{tpu_custom_call.1} parent=15 // pred_check_branch
          %330 = sbr.rel (%p328) target = $region32
        $region31: #{tpu_custom_call.1} parent=15 // pred_region
          %s331 = sand.u32 %s25, 1
          %s332 = scalar_lea.sflag [#allocation11], %s331
          %s333 = sand.u32 %s129, 1
          %s334 = smul.addr %s333, 128
          %s335 = scalar_lea.vmem [#allocation10], %s334
          %s336 = smul.u32 16, %s33
          %338 = vsyncadd %s332, 0
          %s339 = smul.addr %s336, 2
          %s340 = sadd.s32 %s32, %s339
          %s341 = smul.addr %s340, 8
          %s342 = scalar_lea.hbm %s3, %s341
          %s343 = sshll.u32 %s342, 4
          %s344 = int_to_ptr.hbm [resolvable:$true] %s343
          %s345 = sshll.u32 %s335, 4
          %s346 = int_to_ptr.vmem [resolvable:$true] %s345
          %351 = dma.hbm_to_vmem [thread:$0]  %s344, 2048, %s346, %s332, 256, 128, 8
        $region32: #{tpu_custom_call.1} parent=15 // pred_fallthru
          _
        // Predicated region
        $region33: #{tpu_custom_call.1} parent=15 // pred_check
          %p352 = pneg %p165
        $region34: #{tpu_custom_call.1} parent=15 // pred_check_branch
          %354 = sbr.rel (%p352) target = $region36
        $region35: #{tpu_custom_call.1} parent=15 // pred_region
          %p355 = scmp.lt.s32.totalorder %s32, 1
          %s356 = scalar_select %p355, %s32, 1
          %s357 = scalar_lea.vmem %s4, %s356
        $region36: #{tpu_custom_call.1} parent=15 // pred_fallthru
          _
        // Predicated region
        $region37: #{tpu_custom_call.1} parent=15 // pred_check
          %p358 = pneg %p191
        $region38: #{tpu_custom_call.1} parent=15 // pred_check_branch
          %360 = sbr.rel (%p358) target = $region40
        $region39: #{tpu_custom_call.1} parent=15 // pred_region
          %p361 = scmp.lt.s32.totalorder %s32, 1
          %s362 = scalar_select %p361, %s32, 1
          %s363 = scalar_lea.vmem %s5, %s362
        $region40: #{tpu_custom_call.1} parent=15 // pred_fallthru
          _
        // Predicated region
        $region41: #{tpu_custom_call.1} parent=15 // pred_check
          %p364 = pneg %p217
        $region42: #{tpu_custom_call.1} parent=15 // pred_check_branch
          %366 = sbr.rel (%p364) target = $region44
        $region43: #{tpu_custom_call.1} parent=15 // pred_region
          %s367 = sand.u32 %s25, 1
          %s368 = scalar_lea.sflag [#allocation11], %s367
          %s369 = sand.u32 %s207, 1
          %s370 = scalar_lea.vmem [#allocation12], %s369
          %372 = vsyncadd %s368, 0
          %s373 = scalar_lea.hbm %s6, %s32
          %s375 = sshll.u32 %s373, 4
          %s376 = int_to_ptr.hbm [resolvable:$true] %s375
          %s377 = sshll.u32 %s370, 4
          %s378 = int_to_ptr.vmem [resolvable:$true] %s377
          %380 = dma.hbm_to_vmem [thread:$0]  %s376, 16, %s378, %s368
        $region44: #{tpu_custom_call.1} parent=15 // pred_fallthru
          _
      $region16: #{tpu_custom_call.1} parent=5 // pred_fallthru
        _
      %p381 = scmp.le.s32.totalorder 1, %s25
      %p382 = scmp.lt.s32.totalorder %s25, 7
      %p383 = pnand %p381, %p382
      %p384 = pneg %p383
      // Predicated region
      $region45: #{tpu_custom_call.1} parent=5 // pred_check
        _
      $region46: #{tpu_custom_call.1} parent=5 // pred_check_branch
        %386 = sbr.rel (%p383) target = $region48
      $region47: #{tpu_custom_call.1} parent=5 // pred_region
        %s387 = ssub.s32 %s25, 1
        %s388 = sand.u32 %s50, 1
        %s389 = scalar_lea.sflag [#allocation5], %s388
        %s390 = sand.u32 %s50, 1
        %s391 = smul.addr %s390, 8
        %s392 = scalar_lea.vmem [#allocation4], %s391
        // Predicated region
        $region49: #{tpu_custom_call.1} parent=47 // pred_check
          %p393 = pneg %p63
        $region50: #{tpu_custom_call.1} parent=47 // pred_check_branch
          %395 = sbr.rel (%p393) target = $region52
        $region51: #{tpu_custom_call.1} parent=47 // pred_region
          %397 = dma.done %s389, 128
        $region52: #{tpu_custom_call.1} parent=47 // pred_fallthru
          _
        %s398 = sand.u32 %s30, 1
        %s399 = scalar_lea.sflag [#allocation8], %s398
        %s400 = sand.u32 %s76, 1
        %s401 = scalar_lea.vmem [#allocation7], %s400
        // Predicated region
        $region53: #{tpu_custom_call.1} parent=47 // pred_check
          %p402 = pneg %p89
        $region54: #{tpu_custom_call.1} parent=47 // pred_check_branch
          %404 = sbr.rel (%p402) target = $region56
        $region55: #{tpu_custom_call.1} parent=47 // pred_region
          %406 = dma.done %s399, 16
        $region56: #{tpu_custom_call.1} parent=47 // pred_fallthru
          _
        %s407 = sand.u32 %s30, 1
        %s408 = scalar_lea.sflag [#allocation8], %s407
        %s409 = sand.u32 %s104, 1
        %s410 = smul.addr %s409, 128
        %s411 = scalar_lea.vmem [#allocation9], %s410
        // Predicated region
        $region57: #{tpu_custom_call.1} parent=47 // pred_check
          %p412 = pneg %p117
        $region58: #{tpu_custom_call.1} parent=47 // pred_check_branch
          %414 = sbr.rel (%p412) target = $region60
        $region59: #{tpu_custom_call.1} parent=47 // pred_region
          %416 = dma.done %s408, 2048
        $region60: #{tpu_custom_call.1} parent=47 // pred_fallthru
          _
        %s417 = sand.u32 %s30, 1
        %s418 = scalar_lea.sflag [#allocation11], %s417
        %s419 = sand.u32 %s132, 1
        %s420 = smul.addr %s419, 128
        %s421 = scalar_lea.vmem [#allocation10], %s420
        // Predicated region
        $region61: #{tpu_custom_call.1} parent=47 // pred_check
          %p422 = pneg %p145
        $region62: #{tpu_custom_call.1} parent=47 // pred_check_branch
          %424 = sbr.rel (%p422) target = $region64
        $region63: #{tpu_custom_call.1} parent=47 // pred_region
          %426 = dma.done %s418, 2048
        $region64: #{tpu_custom_call.1} parent=47 // pred_fallthru
          _
        %s427 = sand.u32 %s30, 1
        %s428 = scalar_lea.sflag [#allocation11], %s427
        %s429 = sand.u32 %s210, 1
        %s430 = scalar_lea.vmem [#allocation12], %s429
        // Predicated region
        $region65: #{tpu_custom_call.1} parent=47 // pred_check
          %p431 = pneg %p223
        $region66: #{tpu_custom_call.1} parent=47 // pred_check_branch
          %433 = sbr.rel (%p431) target = $region68
        $region67: #{tpu_custom_call.1} parent=47 // pred_region
          %435 = dma.done %s428, 16
        $region68: #{tpu_custom_call.1} parent=47 // pred_fallthru
          _
        %s436 = sand.u32 %s50, 1
        %s437 = scalar_lea.sflag [#allocation5], %s436
        %s438 = sand.u32 %s50, 1
        %s439 = smul.addr %s438, 8
        %s440 = scalar_lea.vmem [#allocation4], %s439
        %p441 = pneg %p63
        %p442 = pneg %p60
        %s443 = sand.u32 %s30, 1
        %s444 = scalar_lea.sflag [#allocation8], %s443
        %s445 = sand.u32 %s76, 1
        %s446 = scalar_lea.vmem [#allocation7], %s445
        %p447 = pneg %p89
        %p448 = pneg %p86
        %s449 = sand.u32 %s30, 1
        %s450 = scalar_lea.sflag [#allocation8], %s449
        %s451 = sand.u32 %s104, 1
        %s452 = smul.addr %s451, 128
        %s453 = scalar_lea.vmem [#allocation9], %s452
        %p454 = pneg %p117
        %p455 = pneg %p114
        %s456 = sand.u32 %s30, 1
        %s457 = scalar_lea.sflag [#allocation11], %s456
        %s458 = sand.u32 %s132, 1
        %s459 = smul.addr %s458, 128
        %s460 = scalar_lea.vmem [#allocation10], %s459
        %p461 = pneg %p145
        %p462 = pneg %p142
        %p463 = scmp.lt.s32.totalorder %s34, 1
        %s464 = scalar_select %p463, %s34, 1
        %s465 = scalar_lea.vmem %s4, %s464
        %p466 = pneg %p171
        %p467 = pneg %p168
        %p468 = scmp.lt.s32.totalorder %s34, 1
        %s469 = scalar_select %p468, %s34, 1
        %s470 = scalar_lea.vmem %s5, %s469
        %p471 = pneg %p197
        %p472 = pneg %p194
        %s473 = sand.u32 %s30, 1
        %s474 = scalar_lea.sflag [#allocation11], %s473
        %s475 = sand.u32 %s210, 1
        %s476 = scalar_lea.vmem [#allocation12], %s475
        %p477 = pneg %p223
        %p478 = pneg %p220
        %p479 = pneg %p249
        %p480 = pneg %p246
        %s481 = sand.u32 %s236, 1
        %s482 = scalar_lea.sflag [#allocation6], %s481
        %s483 = sand.u32 %s236, 1
        %s484 = smul.addr %s483, 8
        %s485 = scalar_lea.vmem [#allocation13], %s484
        %s486 = smul.u32 16, %s35
        %s487 = smul.u32 16, %s35
        %p488 = scmp.lt.s32.totalorder %s34, 1
        %s489 = scalar_select %p488, %s34, 1
        %s490 = scalar_lea.vmem %s4, %s489
        %p491 = scmp.lt.s32.totalorder %s34, 1
        %s492 = scalar_select %p491, %s34, 1
        %s493 = scalar_lea.vmem %s5, %s492
        %p494 = scmp.eq.s32.totalorder %s35, 0
        // Predicated region
        $region69: #{tpu_custom_call.1} parent=47 // pred_check
          %p495 = pneg %p494
        $region70: #{tpu_custom_call.1} parent=47 // pred_check_branch
          %497 = sbr.rel (%p495) target = $region72
        $region71: #{tpu_custom_call.1} parent=47 // pred_region
          %498 = vst [vmem:[#allocation2] sm:$0xff] 0.0
          %499 = vst [vmem:[#allocation3] sm:$0xff] 0.0
        $region72: #{tpu_custom_call.1} parent=47 // pred_fallthru
          _
        %v500 = vld [vmem:[%s392] sm:$0xff]
        %v501 = vld [vmem:[#allocation2] sm:$0xff]
        %v502 = vld [vmem:[%s411] sm:$0xff]
        %v503 = vld [vmem:[%s411 + $0x8] sm:$0xff]
        %v504 = vld [vmem:[%s411 + $0x10] sm:$0xff]
        %v505 = vld [vmem:[%s411 + $0x18] sm:$0xff]
        %v506 = vld [vmem:[%s411 + $0x20] sm:$0xff]
        %v507 = vld [vmem:[%s411 + $0x28] sm:$0xff]
        %v508 = vld [vmem:[%s411 + $0x30] sm:$0xff]
        %v509 = vld [vmem:[%s411 + $0x38] sm:$0xff]
        %v510 = vld [vmem:[%s411 + $0x40] sm:$0xff]
        %v511 = vld [vmem:[%s411 + $0x48] sm:$0xff]
        %v512 = vld [vmem:[%s411 + $0x50] sm:$0xff]
        %v513 = vld [vmem:[%s411 + $0x58] sm:$0xff]
        %v514 = vld [vmem:[%s411 + $0x60] sm:$0xff]
        %v515 = vld [vmem:[%s411 + $0x68] sm:$0xff]
        %v516 = vld [vmem:[%s411 + $0x70] sm:$0xff]
        %v517 = vld [vmem:[%s411 + $0x78] sm:$0xff]
        %518 = vmatpush.msra.mxu0 %v517
        %519 = vmatpush.msra.mxu0 %v516
        %520 = vmatpush.msra.mxu0 %v515
        %521 = vmatpush.msra.mxu0 %v514
        %522 = vmatpush.msra.mxu0 %v513
        %523 = vmatpush.msra.mxu0 %v512
        %524 = vmatpush.msra.mxu0 %v511
        %525 = vmatpush.msra.mxu0 %v510
        %526 = vmatpush.msra.mxu0 %v509
        %527 = vmatpush.msra.mxu0 %v508
        %528 = vmatpush.msra.mxu0 %v507
        %529 = vmatpush.msra.mxu0 %v506
        %530 = vmatpush.msra.mxu0 %v505
        %531 = vmatpush.msra.mxu0 %v504
        %532 = vmatpush.msra.mxu0 %v503
        %533 = vmatpush.msra.mxu0 %v502
        %534 = vmatmul.f32.gmra.mxu0 %v500
        %v535 = vpop.f32.mrf.mxu0
        %v536 = vadd.f32 0.0, %v535
        %537 = vdwg.mxu0
        %v538 = vadd.f32 %v501, %v536
        %539 = vst [vmem:[#allocation2] sm:$0xff] %v538
        %v540 = vld [vmem:[#allocation3] sm:$0xff]
        %v541 = vld [vmem:[%s401] sm:$0x1]
        %v543 = vperm.slane %v541, 0
        %v545 = vmul.f32 %v500, %v543
        %v546 = vld [vmem:[%s421] sm:$0xff]
        %v547 = vld [vmem:[%s421 + $0x8] sm:$0xff]
        %v548 = vld [vmem:[%s421 + $0x10] sm:$0xff]
        %v549 = vld [vmem:[%s421 + $0x18] sm:$0xff]
        %v550 = vld [vmem:[%s421 + $0x20] sm:$0xff]
        %v551 = vld [vmem:[%s421 + $0x28] sm:$0xff]
        %v552 = vld [vmem:[%s421 + $0x30] sm:$0xff]
        %v553 = vld [vmem:[%s421 + $0x38] sm:$0xff]
        %v554 = vld [vmem:[%s421 + $0x40] sm:$0xff]
        %v555 = vld [vmem:[%s421 + $0x48] sm:$0xff]
        %v556 = vld [vmem:[%s421 + $0x50] sm:$0xff]
        %v557 = vld [vmem:[%s421 + $0x58] sm:$0xff]
        %v558 = vld [vmem:[%s421 + $0x60] sm:$0xff]
        %v559 = vld [vmem:[%s421 + $0x68] sm:$0xff]
        %v560 = vld [vmem:[%s421 + $0x70] sm:$0xff]
        %v561 = vld [vmem:[%s421 + $0x78] sm:$0xff]
        %562 = vmatpush.msra.mxu0 %v561
        %563 = vmatpush.msra.mxu0 %v560
        %564 = vmatpush.msra.mxu0 %v559
        %565 = vmatpush.msra.mxu0 %v558
        %566 = vmatpush.msra.mxu0 %v557
        %567 = vmatpush.msra.mxu0 %v556
        %568 = vmatpush.msra.mxu0 %v555
        %569 = vmatpush.msra.mxu0 %v554
        %570 = vmatpush.msra.mxu0 %v553
        %571 = vmatpush.msra.mxu0 %v552
        %572 = vmatpush.msra.mxu0 %v551
        %573 = vmatpush.msra.mxu0 %v550
        %574 = vmatpush.msra.mxu0 %v549
        %575 = vmatpush.msra.mxu0 %v548
        %576 = vmatpush.msra.mxu0 %v547
        %577 = vmatpush.msra.mxu0 %v546
        %578 = vmatmul.f32.gmra.mxu0 %v545
        %v579 = vpop.f32.mrf.mxu0
        %v580 = vadd.f32 0.0, %v579
        %581 = vdwg.mxu0
        %v582 = vadd.f32 %v540, %v580
        %583 = vst [vmem:[#allocation3] sm:$0xff] %v582
        %p584 = scmp.eq.s32.totalorder %s35, 2
        // Predicated region
        $region73: #{tpu_custom_call.1} parent=47 // pred_check
          %p585 = pneg %p584
        $region74: #{tpu_custom_call.1} parent=47 // pred_check_branch
          %587 = sbr.rel (%p585) target = $region76
        $region75: #{tpu_custom_call.1} parent=47 // pred_region
          %v588 = vld [vmem:[%s430] sm:$0x1]
          %v589 = vld [vmem:[%s490] sm:$0x1]
          %v590 = vld [vmem:[%s493] sm:$0x1]
          %v591 = vmul.f32 %v590, %v588
          %v592 = vadd.f32 %v589, %v591
          %v593 = vld [vmem:[#allocation2] sm:$0xff]
          %v594 = vld [vmem:[#allocation3] sm:$0xff]
          %v596 = vperm.slane %v588, 0
          %v598 = vmul.f32 %v596, %v594
          %v599 = vadd.f32 %v593, %v598
          %v601 = vperm.slane %v592, 0
          %v603 = vadd.f32 %v599, %v601
          %604 = vst [vmem:[%s485] sm:$0xff] %v603
        $region76: #{tpu_custom_call.1} parent=47 // pred_fallthru
          _
        %s605 = sand.u32 %s236, 1
        %s606 = scalar_lea.sflag [#allocation6], %s605
        %s607 = sand.u32 %s236, 1
        %s608 = smul.addr %s607, 8
        %s609 = scalar_lea.vmem [#allocation13], %s608
        // Predicated region
        $region77: #{tpu_custom_call.1} parent=47 // pred_check
          %p610 = pneg %p246
        $region78: #{tpu_custom_call.1} parent=47 // pred_check_branch
          %612 = sbr.rel (%p610) target = $region80
        $region79: #{tpu_custom_call.1} parent=47 // pred_region
          %614 = vsyncadd %s606, 0
          %s615 = smul.addr %s34, 8
          %s616 = scalar_lea.hbm %s7, %s615
          %s618 = sshll.u32 %s609, 4
          %s619 = int_to_ptr.vmem [resolvable:$true] %s618
          %s620 = sshll.u32 %s616, 4
          %s621 = int_to_ptr.hbm [resolvable:$true] %s620
          %623 = dma.vmem_to_hbm [thread:$0]  %s619, 128, %s621, %s606
        $region80: #{tpu_custom_call.1} parent=47 // pred_fallthru
          _
      $region48: #{tpu_custom_call.1} parent=5 // pred_fallthru
        _
      %p624 = scmp.le.s32.totalorder 2, %s25
      // Predicated region
      $region81: #{tpu_custom_call.1} parent=5 // pred_check
        %p625 = pneg %p624
      $region82: #{tpu_custom_call.1} parent=5 // pred_check_branch
        %627 = sbr.rel (%p625) target = $region84
      $region83: #{tpu_custom_call.1} parent=5 // pred_region
        %s628 = ssub.s32 %s25, 2
        // Predicated region
        $region85: #{tpu_custom_call.1} parent=83 // pred_check
          %p629 = pneg %p252
        $region86: #{tpu_custom_call.1} parent=83 // pred_check_branch
          %631 = sbr.rel (%p629) target = $region88
        $region87: #{tpu_custom_call.1} parent=83 // pred_region
          %s632 = sand.u32 %s237, 1
          %s633 = scalar_lea.sflag [#allocation6], %s632
          %s634 = sand.u32 %s237, 1
          %s635 = smul.addr %s634, 8
          %s636 = scalar_lea.vmem [#allocation13], %s635
          %638 = dma.done %s633, 128
        $region88: #{tpu_custom_call.1} parent=83 // pred_fallthru
          _
      $region84: #{tpu_custom_call.1} parent=5 // pred_fallthru
        _
    $region6: #{tpu_custom_call.1} parent=1 // loop_footer
      %s29 = sadd.s32 1, %s25
    $region7: #{tpu_custom_call.1} parent=1 // loop_footer_branch
      %24 = sbr.rel target = $region3
    $region8: #{tpu_custom_call.1} parent=1 // loop_exit
      _
    %639 = vsyncpa [#allocation5], 1
    %s640 = scalar_lea.sflag [#allocation5], 1
    %641 = vsyncpa %s640, 1
    %642 = vsyncpa [#allocation8], 1
    %s643 = scalar_lea.sflag [#allocation8], 1
    %644 = vsyncpa %s643, 1
    %645 = vsyncpa [#allocation11], 1
    %s646 = scalar_lea.sflag [#allocation11], 1
    %647 = vsyncpa %s646, 1
    %648 = vsyncpa [#allocation6], 1
    %s649 = scalar_lea.sflag [#allocation6], 1
    %650 = vsyncpa %s649, 1

</llo_original>
